<compile_context>
chip_gen: v7x
topology: tpu7x:2x2x1
jax: 0.10.0
libtpu: 0.0.40
codegen_flags: <defaults>
</compile_context>

<pallas_src>
import functools
import math

import jax
import jax.numpy as jnp
from jax.experimental import pallas as pl
from jax.experimental.pallas import tpu as pltpu


_NEG_INF = -1e9


def _round_up(x, m):
    return ((x + m - 1) // m) * m


def _vmem_budget_and_limit():
    """Generation-aware VMEM budgeting (v5e/v6e: 128 MiB VMEM, v7x: 64 MiB)."""
    cap = 64 * 1024 * 1024  # conservative default (v7x per-TC VMEM)
    try:
        cap = int(pltpu.get_tpu_info().vmem_capacity_bytes)
    except Exception:
        pass
    if cap >= 96 * 1024 * 1024:           # v5e / v6e
        return 56 * 1024 * 1024, 96 * 1024 * 1024
    return 24 * 1024 * 1024, 44 * 1024 * 1024   # v7x


def _sdpa_kernel(*refs, scale_const, has_bias, gate, kv_valid, kv_block,
                 probs_bf16, need_attn):
    idx = 0
    q_ref = refs[idx]; idx += 1
    k_ref = refs[idx]; idx += 1
    v_ref = refs[idx]; idx += 1
    bias_ref = None
    if has_bias:
        bias_ref = refs[idx]; idx += 1
    out_ref = refs[idx]; idx += 1
    attn_ref = refs[idx] if need_attn else None

    q = q_ref[...]                       # (TB, TQ, D)
    if scale_const is not None:
        # Pre-scale q: TQ*D VPU multiplies instead of TQ*Lk on the score matrix.
        q = q * jnp.asarray(scale_const, q.dtype)
    k = k_ref[...]                       # (TB, Lk, D)
    v = v_ref[...]                       # (TB, Lk, Dv)

    # scores = q @ k^T : batched contraction on the shared trailing feature
    # axis; the MXU consumes the (Lk, D) K block directly (no transpose).
    scores = jnp.einsum("bqd,bkd->bqk", q, k, preferred_element_type=jnp.float32)

    if has_bias:
        bias = bias_ref[...].astype(jnp.float32)
        if gate:
            # GAU-style gating. The bias already carries -1e9 at masked (and
            # lane-padded) key positions, so z == 0 there and the gated score
            # is exactly -1e9, matching the reference masked_fill-on-both form.
            z = jax.nn.sigmoid(scores + bias)
            scores = bias + z * (scores - bias)      # == z*s + (1-z)*bias
        else:
            scores = scores + bias                   # additive mask bias (0 / -1e9)
    elif kv_valid < kv_block:
        # Lane-dense padding added key columns and there is no bias stream to
        # carry the -1e9; mask the padded lanes here.
        lane = jax.lax.broadcasted_iota(jnp.int32, scores.shape, scores.ndim - 1)
        scores = jnp.where(lane < kv_valid, scores, _NEG_INF)

    # softmax over keys (torch dim=2)
    m = jnp.max(scores, axis=-1, keepdims=True)
    e = jnp.exp(scores - m)
    denom = jnp.sum(e, axis=-1, keepdims=True)
    probs = e * (1.0 / denom)        # exact per-row reciprocal: attn is user-visible

    # TODO(synk): nn.Dropout path not implemented (module default dropout=0).

    if probs_bf16:
        pv = jnp.einsum("bqk,bkd->bqd", probs.astype(jnp.bfloat16),
                        v.astype(jnp.bfloat16),
                        preferred_element_type=jnp.float32)
    else:
        pv = jnp.einsum("bqk,bkd->bqd", probs.astype(v.dtype), v,
                        preferred_element_type=jnp.float32)

    out_ref[...] = pv.astype(out_ref.dtype)
    if need_attn:
        attn_ref[...] = probs.astype(attn_ref.dtype)


def _choose_tiles(B, Lq_p, Lk_p, D, Dv_p, q_sz, k_sz, v_sz, bias_sz,
                  out_sz, attn_sz, budget, block_q):
    """Pick (TB, TQ) so the per-step working set fits the VMEM budget."""

    def step_bytes(tb, tq):
        # double-buffered pipelined blocks
        pipelined = tb * (tq * D * q_sz                       # q
                          + tq * Dv_p * out_sz                # out
                          + tq * Lk_p * (attn_sz + bias_sz)   # attn out + bias/prior
                          + Lk_p * (D * k_sz + Dv_p * v_sz))  # resident k/v
        # simultaneously-live f32 compute temporaries (scores / z / e / probs
        # plus the f32 PV accumulator) — not pipelined, counted once.
        temps = tb * tq * (4 * Lk_p + Dv_p) * 4
        return 2 * pipelined + temps

    if block_q is not None:
        tq = min(_round_up(max(block_q, 1), 8), Lq_p)
    else:
        # Cap TQ at 256 MXU rows; prefer the whole (small) Lq only when it is
        # itself <= 256, so softmax/gating temporaries stay in vregs.
        cands = [c for c in (256, 128, 64, 32, 16, 8) if c <= Lq_p]
        if Lq_p <= 256 and Lq_p not in cands:
            cands.insert(0, Lq_p)
        tq = cands[-1] if cands else Lq_p
        for c in cands:
            if step_bytes(1, c) <= budget:
                tq = c
                break

    tb = 1
    if tq >= Lq_p:
        # Whole Lq per step (GRAN-sized tiny graphs): pack several batch
        # elements per grid step to amortize the ~0.35 us/step overhead.
        for cand in range(min(B, 64), 1, -1):
            if B % cand == 0 and step_bytes(cand, tq) <= budget:
                tb = cand
                break
    return tb, tq


def scaled_dot_product_attention(q, k, v, mask=None, prior_info=None, scale=True,
                                 *, need_attn=True, probs_in_bf16=False,
                                 block_q=None):
    """Pallas equivalent of ScaledDotProductAttention.forward.

    q: [B, Lq, D], k: [B, Lk, D], v: [B, Lk, Dv]
    mask: optional [B, Lq, Lk] (bool / int, True => masked)
    prior_info: optional [B, Lq, Lk] float
    returns (output [B, Lq, Dv], attn [B, Lq, Lk] or None if need_attn=False)
    """
    B, Lq, D = q.shape
    _, Lk, _ = k.shape
    Dv = v.shape[-1]

    # Lane-dense padding: Lk/Dv -> multiples of 128, Lq -> multiple of 8, so the
    # out / attn stores are unmasked full-lane vst's. Sliced off after the call.
    Lq_p = _round_up(Lq, 8)
    Lk_p = _round_up(Lk, 128)
    Dv_p = _round_up(Dv, 128)

    def _pad23(x, d1, d2):
        p1, p2 = d1 - x.shape[1], d2 - x.shape[2]
        if p1 == 0 and p2 == 0:
            return x
        return jnp.pad(x, ((0, 0), (0, p1), (0, p2)))

    qp = _pad23(q, Lq_p, D)
    kp = _pad23(k, Lk_p, D)
    vp = _pad23(v, Lk_p, Dv_p)

    has_bias = (mask is not None) or (prior_info is not None)
    gate = prior_info is not None
    bias = None
    if has_bias:
        if prior_info is not None:
            # Fold the mask into the prior on the host (masked positions hold
            # -1e9): the sigmoid gate then drives the gated score to exactly
            # -1e9, so only one side stream reaches the kernel.
            bias = prior_info
            if mask is not None:
                mb = mask if mask.dtype == jnp.bool_ else (mask != 0)
                bias = jnp.where(mb, jnp.asarray(_NEG_INF, bias.dtype), bias)
        else:
            # mask-only: additive bf16 bias (0 keep / -1e9 fill) — no int8
            # unpack / compare / select in the kernel.
            mb = mask if mask.dtype == jnp.bool_ else (mask != 0)
            bias = jnp.where(mb, _NEG_INF, 0.0).astype(jnp.bfloat16)
        # pad: extra query rows -> 0, extra key columns -> -1e9 (stay masked)
        if Lq_p != Lq:
            bias = jnp.pad(bias, ((0, 0), (0, Lq_p - Lq), (0, 0)))
        if Lk_p != Lk:
            bias = jnp.pad(bias, ((0, 0), (0, 0), (0, Lk_p - Lk)),
                           constant_values=_NEG_INF)

    attn_dtype = q.dtype                               # dtype-following attn output
    budget, vmem_limit = _vmem_budget_and_limit()
    bias_sz = jnp.dtype(bias.dtype).itemsize if has_bias else 0

    tb, tq = _choose_tiles(
        B, Lq_p, Lk_p, D, Dv_p,
        jnp.dtype(q.dtype).itemsize, jnp.dtype(k.dtype).itemsize,
        jnp.dtype(v.dtype).itemsize, bias_sz,
        jnp.dtype(q.dtype).itemsize,
        jnp.dtype(attn_dtype).itemsize if need_attn else 0,
        budget, block_q)

    grid = (B // tb, pl.cdiv(Lq_p, tq))

    kernel = functools.partial(
        _sdpa_kernel,
        scale_const=(1.0 / math.sqrt(D)) if scale else None,
        has_bias=has_bias,
        gate=gate,
        kv_valid=Lk,
        kv_block=Lk_p,
        probs_bf16=probs_in_bf16,
        need_attn=need_attn,
    )

    inputs = [qp, kp, vp]
    in_specs = [
        pl.BlockSpec((tb, tq, D), lambda b, i: (b, i, 0)),
        pl.BlockSpec((tb, Lk_p, D), lambda b, i: (b, 0, 0)),     # resident across i
        pl.BlockSpec((tb, Lk_p, Dv_p), lambda b, i: (b, 0, 0)),  # resident across i
    ]
    # TODO(synk): consider pipeline_mode=pl.Buffered(1) for the resident K/V
    # blocks (they only change at batch boundaries) once single-buffering is
    # confirmed supported on the deployment jax build.
    if has_bias:
        inputs.append(bias)
        in_specs.append(pl.BlockSpec((tb, tq, Lk_p), lambda b, i: (b, i, 0)))

    out_spec_out = pl.BlockSpec((tb, tq, Dv_p), lambda b, i: (b, i, 0))
    if need_attn:
        out_shape = (jax.ShapeDtypeStruct((B, Lq_p, Dv_p), q.dtype),
                     jax.ShapeDtypeStruct((B, Lq_p, Lk_p), attn_dtype))
        out_specs = (out_spec_out,
                     pl.BlockSpec((tb, tq, Lk_p), lambda b, i: (b, i, 0)))
    else:
        out_shape = jax.ShapeDtypeStruct((B, Lq_p, Dv_p), q.dtype)
        out_specs = out_spec_out

    # Megacore: shard the batch axis when it has >=2 blocks so each core keeps
    # its own resident K/V (the Lq axis never re-DMAs K/V); otherwise expose
    # the Lq axis for sharding.
    if grid[0] >= 2:
        dims = ("parallel", "arbitrary")
    else:
        dims = ("arbitrary", "parallel")

    res = pl.pallas_call(
        kernel,
        out_shape=out_shape,
        grid_spec=pltpu.PrefetchScalarGridSpec(
            num_scalar_prefetch=0,
            grid=grid,
            in_specs=in_specs,
            out_specs=out_specs,
        ),
        compiler_params=pltpu.CompilerParams(
            dimension_semantics=dims,
            vmem_limit_bytes=vmem_limit,
        ),
    )(*inputs)

    if need_attn:
        out_p, attn_p = res
        return out_p[:, :Lq, :Dv], attn_p[:, :Lq, :Lk]
    return res[:, :Lq, :Dv], None


def _reference(q, k, v, mask=None, prior_info=None, scale=True):
    attn = jnp.einsum("bqd,bkd->bqk", q, k)
    if scale:
        attn = attn / math.sqrt(k.shape[-1])
    if mask is not None:
        attn = jnp.where(mask, _NEG_INF, attn)
    if prior_info is not None:
        p = jnp.where(mask, _NEG_INF, prior_info) if mask is not None else prior_info
        z = jax.nn.sigmoid(attn + p)
        attn = z * attn + (1 - z) * p
    attn = jax.nn.softmax(attn, axis=2)
    out = jnp.einsum("bqk,bkd->bqd", attn, v)
    return out, attn


if __name__ == "__main__":
    key = jax.random.PRNGKey(0)
    B, Lq, Lk, D, Dv = 2, 8, 8, 32, 32
    kq, kk, kv, kp = jax.random.split(key, 4)
    q = jax.random.normal(kq, (B, Lq, D), dtype=jnp.float32)
    k = jax.random.normal(kk, (B, Lk, D), dtype=jnp.float32)
    v = jax.random.normal(kv, (B, Lk, Dv), dtype=jnp.float32)

    TOL = dict(atol=2e-3, rtol=2e-3)

    # 1) Base case (no mask / prior) — exercises TB batching + padded-key iota mask.
    out, attn = scaled_dot_product_attention(q, k, v)
    jax.block_until_ready((out, attn))
    ref_out, ref_attn = _reference(q, k, v)
    assert jnp.allclose(out, ref_out, **TOL), "output mismatch"
    assert jnp.allclose(attn, ref_attn, **TOL), "attn mismatch"

    # 2) Causal mask only — exercises the additive bf16 bias stream.
    mask = jnp.triu(jnp.ones((Lq, Lk), dtype=bool), k=1)[None].repeat(B, axis=0)
    out1, attn1 = scaled_dot_product_attention(q, k, v, mask=mask)
    jax.block_until_ready((out1, attn1))
    ref_out1, ref_attn1 = _reference(q, k, v, mask=mask)
    assert jnp.allclose(out1, ref_out1, **TOL), "masked output mismatch"
    assert jnp.allclose(attn1, ref_attn1, **TOL), "masked attn mismatch"

    # 3) Mask + prior-info gating — mask folded into the prior on the host.
    prior = jax.random.normal(kp, (B, Lq, Lk), dtype=jnp.float32)
    out2, attn2 = scaled_dot_product_attention(q, k, v, mask=mask, prior_info=prior)
    jax.block_until_ready((out2, attn2))
    ref_out2, ref_attn2 = _reference(q, k, v, mask=mask, prior_info=prior)
    assert jnp.allclose(out2, ref_out2, **TOL), "gated output mismatch"
    assert jnp.allclose(attn2, ref_attn2, **TOL), "gated attn mismatch"

    # 4) Forced Lq tiling (block_q=8 on Lq=16) — exercises the tiled grid path
    #    with K/V resident across the Lq axis.
    B2, L2 = 2, 16
    q2 = jax.random.normal(kq, (B2, L2, D), dtype=jnp.float32)
    k2 = jax.random.normal(kk, (B2, L2, D), dtype=jnp.float32)
    v2 = jax.random.normal(kv, (B2, L2, Dv), dtype=jnp.float32)
    mask2 = jnp.triu(jnp.ones((L2, L2), dtype=bool), k=1)[None].repeat(B2, axis=0)
    prior2 = jax.random.normal(kp, (B2, L2, L2), dtype=jnp.float32)
    out3, attn3 = scaled_dot_product_attention(
        q2, k2, v2, mask=mask2, prior_info=prior2, block_q=8)
    jax.block_until_ready((out3, attn3))
    ref_out3, ref_attn3 = _reference(q2, k2, v2, mask=mask2, prior_info=prior2)
    assert jnp.allclose(out3, ref_out3, **TOL), "tiled output mismatch"
    assert jnp.allclose(attn3, ref_attn3, **TOL), "tiled attn mismatch"

    # 5) Odd shapes (B=3, Lq=Lk=10, Dv=20) — exercises Lq/Lk/Dv padding paths.
    B3, L3, Dv3 = 3, 10, 20
    q3 = jax.random.normal(kq, (B3, L3, D), dtype=jnp.float32)
    k3 = jax.random.normal(kk, (B3, L3, D), dtype=jnp.float32)
    v3 = jax.random.normal(kv, (B3, L3, Dv3), dtype=jnp.float32)
    mask3 = jnp.triu(jnp.ones((L3, L3), dtype=bool), k=1)[None].repeat(B3, axis=0)
    prior3 = jax.random.normal(kp, (B3, L3, L3), dtype=jnp.float32)
    out4, attn4 = scaled_dot_product_attention(q3, k3, v3, mask=mask3,
                                               prior_info=prior3)
    jax.block_until_ready((out4, attn4))
    ref_out4, ref_attn4 = _reference(q3, k3, v3, mask=mask3, prior_info=prior3)
    assert jnp.allclose(out4, ref_out4, **TOL), "padded output mismatch"
    assert jnp.allclose(attn4, ref_attn4, **TOL), "padded attn mismatch"

    # 6) need_attn=False — drops the attention writeback (GRAN's GAU call uses
    #    output_attentions=False).
    out5, attn5 = scaled_dot_product_attention(q, k, v, mask=mask, need_attn=False)
    jax.block_until_ready(out5)
    assert attn5 is None
    assert jnp.allclose(out5, ref_out1, **TOL), "need_attn=False output mismatch"

    print("KERNEL_OK")
</pallas_src>

<mosaic_0001>
module attributes {stable_mosaic.version = 11 : i64} {
  func.func @_sdpa_kernel(%arg0: i32, %arg1: i32, %arg2: memref<2x8x32xf32, #tpu.memory_space<vmem>>, %arg3: memref<2x128x32xf32, #tpu.memory_space<vmem>>, %arg4: memref<2x128x128xf32, #tpu.memory_space<vmem>>, %arg5: memref<2x8x128xf32, #tpu.memory_space<vmem>>, %arg6: memref<2x8x128xf32, #tpu.memory_space<vmem>>) attributes {dimension_semantics = [#tpu.dimension_semantics<arbitrary>, #tpu.dimension_semantics<parallel>], iteration_bounds = array<i64: 1, 1>, scalar_prefetch = 0 : i64, scratch_operands = 0 : i64, tpu.core_type = #tpu.core_type<tc>, window_params = [{transform_indices = @transform_0, window_bounds = array<i64: 2, 8, 32>}, {transform_indices = @transform_1, window_bounds = array<i64: 2, 128, 32>}, {transform_indices = @transform_2, window_bounds = array<i64: 2, 128, 128>}, {transform_indices = @transform_3, window_bounds = array<i64: 2, 8, 128>}, {transform_indices = @transform_4, window_bounds = array<i64: 2, 8, 128>}]} {
    %c0 = arith.constant 0 : index
    %c0_0 = arith.constant 0 : index
    %c0_1 = arith.constant 0 : index
    %0 = vector.load %arg2[%c0, %c0_0, %c0_1] : memref<2x8x32xf32, #tpu.memory_space<vmem>>, vector<2x8x32xf32>
    %cst = arith.constant 0.176776692 : f32
    %1 = vector.broadcast %cst : f32 to vector<2x8x32xf32>
    %2 = arith.mulf %0, %1 : vector<2x8x32xf32>
    %c0_2 = arith.constant 0 : index
    %c0_3 = arith.constant 0 : index
    %c0_4 = arith.constant 0 : index
    %3 = vector.load %arg3[%c0_2, %c0_3, %c0_4] : memref<2x128x32xf32, #tpu.memory_space<vmem>>, vector<2x128x32xf32>
    %c0_5 = arith.constant 0 : index
    %c0_6 = arith.constant 0 : index
    %c0_7 = arith.constant 0 : index
    %4 = vector.load %arg4[%c0_5, %c0_6, %c0_7] : memref<2x128x128xf32, #tpu.memory_space<vmem>>, vector<2x128x128xf32>
    "tpu.trace_start"() <{level = 10 : i32, message = "bqd,bkd->bqk"}> : () -> ()
    %cst_8 = arith.constant dense<0.000000e+00> : vector<2x8x128xf32>
    %5 = tpu.matmul %2, %3, %cst_8 {dimension_numbers = #tpu.dot_dimension_numbers<[2], [2], [1], [1], [0, 0, 0, 1, 1, 1], [0], [0]>} : vector<2x8x32xf32>, vector<2x128x32xf32>, vector<2x8x128xf32> -> vector<2x8x128xf32>
    "tpu.trace_stop"() : () -> ()
    %6 = tpu.iota {dimensions = array<i32: 2>} : vector<2x8x128xi32>
    %c8_i32 = arith.constant 8 : i32
    %7 = vector.broadcast %c8_i32 : i32 to vector<2x8x128xi32>
    %8 = arith.cmpi slt, %6, %7 : vector<2x8x128xi32>
    %cst_9 = arith.constant -1.000000e+09 : f32
    %9 = vector.broadcast %cst_9 : f32 to vector<2x8x128xf32>
    %10 = arith.select %8, %5, %9 : vector<2x8x128xi1>, vector<2x8x128xf32>
    %cst_10 = arith.constant dense<0xFF800000> : vector<2x8xf32>
    %11 = vector.multi_reduction <maximumf>, %10, %cst_10 [2] : vector<2x8x128xf32> to vector<2x8xf32>
    %12 = vector.shape_cast %11 : vector<2x8xf32> to vector<2x8x1xf32>
    %13 = vector.broadcast %12 : vector<2x8x1xf32> to vector<2x8x128xf32>
    %14 = arith.subf %10, %13 : vector<2x8x128xf32>
    %15 = math.exp %14 : vector<2x8x128xf32>
    %cst_11 = arith.constant dense<0.000000e+00> : vector<2x8xf32>
    %16 = vector.multi_reduction <add>, %15, %cst_11 [2] : vector<2x8x128xf32> to vector<2x8xf32>
    %17 = vector.shape_cast %16 : vector<2x8xf32> to vector<2x8x1xf32>
    %cst_12 = arith.constant 1.000000e+00 : f32
    %18 = vector.broadcast %cst_12 : f32 to vector<2x8x1xf32>
    %19 = arith.divf %18, %17 : vector<2x8x1xf32>
    %20 = vector.broadcast %19 : vector<2x8x1xf32> to vector<2x8x128xf32>
    %21 = arith.mulf %15, %20 : vector<2x8x128xf32>
    "tpu.trace_start"() <{level = 10 : i32, message = "bqk,bkd->bqd"}> : () -> ()
    %cst_13 = arith.constant dense<0.000000e+00> : vector<2x8x128xf32>
    %22 = tpu.matmul %21, %4, %cst_13 {dimension_numbers = #tpu.dot_dimension_numbers<[2], [1], [1], [2], [0, 0, 0, 1, 1, 2], [0], [0]>} : vector<2x8x128xf32>, vector<2x128x128xf32>, vector<2x8x128xf32> -> vector<2x8x128xf32>
    "tpu.trace_stop"() : () -> ()
    %c0_14 = arith.constant 0 : index
    %c0_15 = arith.constant 0 : index
    %c0_16 = arith.constant 0 : index
    %23 = vector.load %arg5[%c0_14, %c0_15, %c0_16] : memref<2x8x128xf32, #tpu.memory_space<vmem>>, vector<2x8x128xf32>
    tpu.vector_store %arg5[%c0_14, %c0_15, %c0_16], %22 {strides = array<i32>} : memref<2x8x128xf32, #tpu.memory_space<vmem>>, vector<2x8x128xf32>,
    %c0_17 = arith.constant 0 : index
    %c0_18 = arith.constant 0 : index
    %c0_19 = arith.constant 0 : index
    %24 = vector.load %arg6[%c0_17, %c0_18, %c0_19] : memref<2x8x128xf32, #tpu.memory_space<vmem>>, vector<2x8x128xf32>
    tpu.vector_store %arg6[%c0_17, %c0_18, %c0_19], %21 {strides = array<i32>} : memref<2x8x128xf32, #tpu.memory_space<vmem>>, vector<2x8x128xf32>,
    return
  }
  func.func @transform_0(%arg0: i32, %arg1: i32) -> (i32, i32, i32) {
    %c0_i32 = arith.constant 0 : i32
    %c0_i32_0 = arith.constant 0 : i32
    return %arg0, %arg1, %c0_i32 : i32, i32, i32
  }
  func.func @transform_1(%arg0: i32, %arg1: i32) -> (i32, i32, i32) {
    %c0_i32 = arith.constant 0 : i32
    %c0_i32_0 = arith.constant 0 : i32
    %c0_i32_1 = arith.constant 0 : i32
    return %arg0, %c0_i32, %c0_i32_0 : i32, i32, i32
  }
  func.func @transform_2(%arg0: i32, %arg1: i32) -> (i32, i32, i32) {
    %c0_i32 = arith.constant 0 : i32
    %c0_i32_0 = arith.constant 0 : i32
    %c0_i32_1 = arith.constant 0 : i32
    return %arg0, %c0_i32, %c0_i32_0 : i32, i32, i32
  }
  func.func @transform_3(%arg0: i32, %arg1: i32) -> (i32, i32, i32) {
    %c0_i32 = arith.constant 0 : i32
    %c0_i32_0 = arith.constant 0 : i32
    return %arg0, %arg1, %c0_i32 : i32, i32, i32
  }
  func.func @transform_4(%arg0: i32, %arg1: i32) -> (i32, i32, i32) {
    %c0_i32 = arith.constant 0 : i32
    %c0_i32_0 = arith.constant 0 : i32
    return %arg0, %arg1, %c0_i32 : i32, i32, i32
  }
}

</mosaic_0001>

<llo_original>
// kernel: tpu_custom_call.1
$region0: #{tpu_custom_call.1}
  #allocation0 [shape = 'u32[]', space=smem, size = 0x4, offset = 0x4, fixed_abs, tag = 'smem constant byte address 0x4 - core index']
  #allocation1 [shape = 'u32[144,128]{1,0:T(1,128)}', space=vmem, size = 0x12000, scoped, tag = 'internal scratch']
  %s0 = inlined_call_operand.vmem [shape: f32[2,8,32], index: 0, kind: input, shape index: {}]
  %s1 = inlined_call_operand.vmem [shape: f32[2,128,32], index: 1, kind: input, shape index: {}]
  %s2 = inlined_call_operand.vmem [shape: f32[2,128,128], index: 2, kind: input, shape index: {}]
  %s3 = inlined_call_operand.hbm [shape: f32[2,8,128], index: 3, kind: output, shape index: {0}]
  %s4 = inlined_call_operand.hbm [shape: f32[2,8,128], index: 4, kind: output, shape index: {1}]
  %5 = xla_tuple %s3, %s4
  %s6 = sld [smem:[#allocation0]]
  $region30: #{tpu_custom_call.1} parent=0
    _
  %s8 = ssub.s32 1, %s6
  %s9 = scalar_select 0, %s8, %s6
  $region1: #{tpu_custom_call.1} parent=0
    #allocation2 [shape = 'u8[8192]{0}', space=vmem, size = 0x2000, scoped, tag = 'output window, operand 0, single buffered']
    #allocation3 [shape = 's32[1]{0}', space=sflag, size = 0x4, scoped, tag = 'scoped memory for tpu_custom_call.1']
    #allocation4 [shape = 'u8[8192]{0}', space=vmem, size = 0x2000, scoped, tag = 'output window, operand 1, single buffered']
    #allocation5 [shape = 's32[1]{0}', space=sflag, size = 0x4, scoped, tag = 'scoped memory for tpu_custom_call.1']
    %10 = vsyncpa [#allocation3], 0
    %11 = vsyncpa [#allocation5], 0
    // Predicated region
    $region2: #{tpu_custom_call.1} parent=1 // pred_check
      _
    $region3: #{tpu_custom_call.1} parent=1 // pred_check_branch
      %13 = sbr.rel (0) target = $region5
    $region4: #{tpu_custom_call.1} parent=1 // pred_region
      _
    $region5: #{tpu_custom_call.1} parent=1 // pred_fallthru
      _
    // Predicated region
    $region6: #{tpu_custom_call.1} parent=1 // pred_check
      _
    $region7: #{tpu_custom_call.1} parent=1 // pred_check_branch
      %15 = sbr.rel (0) target = $region9
    $region8: #{tpu_custom_call.1} parent=1 // pred_region
      _
    $region9: #{tpu_custom_call.1} parent=1 // pred_fallthru
      _
    // Predicated region
    $region10: #{tpu_custom_call.1} parent=1 // pred_check
      _
    $region11: #{tpu_custom_call.1} parent=1 // pred_check_branch
      %17 = sbr.rel (0) target = $region13
    $region12: #{tpu_custom_call.1} parent=1 // pred_region
      _
    $region13: #{tpu_custom_call.1} parent=1 // pred_fallthru
      _
    %v18 = vld [vmem:[%s0] sm:$0xff]
    %v19 = vld [vmem:[%s0 + $0x8] sm:$0xff]
    %v20 = vmul.f32 %v18, 0.17677669
    %v21 = vmul.f32 %v19, 0.17677669
    %v22 = vld [vmem:[%s1] sm:$0xff]
    %v23 = vld [vmem:[%s1 + $0x8] sm:$0xff]
    %v24 = vld [vmem:[%s1 + $0x10] sm:$0xff]
    %v25 = vld [vmem:[%s1 + $0x18] sm:$0xff]
    %v26 = vld [vmem:[%s1 + $0x20] sm:$0xff]
    %v27 = vld [vmem:[%s1 + $0x28] sm:$0xff]
    %v28 = vld [vmem:[%s1 + $0x30] sm:$0xff]
    %v29 = vld [vmem:[%s1 + $0x38] sm:$0xff]
    %v30 = vld [vmem:[%s1 + $0x40] sm:$0xff]
    %v31 = vld [vmem:[%s1 + $0x48] sm:$0xff]
    %v32 = vld [vmem:[%s1 + $0x50] sm:$0xff]
    %v33 = vld [vmem:[%s1 + $0x58] sm:$0xff]
    %v34 = vld [vmem:[%s1 + $0x60] sm:$0xff]
    %v35 = vld [vmem:[%s1 + $0x68] sm:$0xff]
    %v36 = vld [vmem:[%s1 + $0x70] sm:$0xff]
    %v37 = vld [vmem:[%s1 + $0x78] sm:$0xff]
    %v38 = vld [vmem:[%s1 + $0x80] sm:$0xff]
    %v39 = vld [vmem:[%s1 + $0x88] sm:$0xff]
    %v40 = vld [vmem:[%s1 + $0x90] sm:$0xff]
    %v41 = vld [vmem:[%s1 + $0x98] sm:$0xff]
    %v42 = vld [vmem:[%s1 + $0xa0] sm:$0xff]
    %v43 = vld [vmem:[%s1 + $0xa8] sm:$0xff]
    %v44 = vld [vmem:[%s1 + $0xb0] sm:$0xff]
    %v45 = vld [vmem:[%s1 + $0xb8] sm:$0xff]
    %v46 = vld [vmem:[%s1 + $0xc0] sm:$0xff]
    %v47 = vld [vmem:[%s1 + $0xc8] sm:$0xff]
    %v48 = vld [vmem:[%s1 + $0xd0] sm:$0xff]
    %v49 = vld [vmem:[%s1 + $0xd8] sm:$0xff]
    %v50 = vld [vmem:[%s1 + $0xe0] sm:$0xff]
    %v51 = vld [vmem:[%s1 + $0xe8] sm:$0xff]
    %v52 = vld [vmem:[%s1 + $0xf0] sm:$0xff]
    %v53 = vld [vmem:[%s1 + $0xf8] sm:$0xff]
    %v54 = vld [vmem:[%s2] sm:$0xff]
    %v55 = vld [vmem:[%s2 + $0x8] sm:$0xff]
    %v56 = vld [vmem:[%s2 + $0x10] sm:$0xff]
    %v57 = vld [vmem:[%s2 + $0x18] sm:$0xff]
    %v58 = vld [vmem:[%s2 + $0x20] sm:$0xff]
    %v59 = vld [vmem:[%s2 + $0x28] sm:$0xff]
    %v60 = vld [vmem:[%s2 + $0x30] sm:$0xff]
    %v61 = vld [vmem:[%s2 + $0x38] sm:$0xff]
    %v62 = vld [vmem:[%s2 + $0x40] sm:$0xff]
    %v63 = vld [vmem:[%s2 + $0x48] sm:$0xff]
    %v64 = vld [vmem:[%s2 + $0x50] sm:$0xff]
    %v65 = vld [vmem:[%s2 + $0x58] sm:$0xff]
    %v66 = vld [vmem:[%s2 + $0x60] sm:$0xff]
    %v67 = vld [vmem:[%s2 + $0x68] sm:$0xff]
    %v68 = vld [vmem:[%s2 + $0x70] sm:$0xff]
    %v69 = vld [vmem:[%s2 + $0x78] sm:$0xff]
    %v70 = vld [vmem:[%s2 + $0x80] sm:$0xff]
    %v71 = vld [vmem:[%s2 + $0x88] sm:$0xff]
    %v72 = vld [vmem:[%s2 + $0x90] sm:$0xff]
    %v73 = vld [vmem:[%s2 + $0x98] sm:$0xff]
    %v74 = vld [vmem:[%s2 + $0xa0] sm:$0xff]
    %v75 = vld [vmem:[%s2 + $0xa8] sm:$0xff]
    %v76 = vld [vmem:[%s2 + $0xb0] sm:$0xff]
    %v77 = vld [vmem:[%s2 + $0xb8] sm:$0xff]
    %v78 = vld [vmem:[%s2 + $0xc0] sm:$0xff]
    %v79 = vld [vmem:[%s2 + $0xc8] sm:$0xff]
    %v80 = vld [vmem:[%s2 + $0xd0] sm:$0xff]
    %v81 = vld [vmem:[%s2 + $0xd8] sm:$0xff]
    %v82 = vld [vmem:[%s2 + $0xe0] sm:$0xff]
    %v83 = vld [vmem:[%s2 + $0xe8] sm:$0xff]
    %v84 = vld [vmem:[%s2 + $0xf0] sm:$0xff]
    %v85 = vld [vmem:[%s2 + $0xf8] sm:$0xff]
    %vm86 = vcmask 261120
    %v88 = vsel %vm86, %v20, 0
    %v91 = vsel %vm86, %v22, 0
    %v94 = vsel %vm86, %v23, 0
    %v97 = vsel %vm86, %v24, 0
    %v100 = vsel %vm86, %v25, 0
    %v103 = vsel %vm86, %v26, 0
    %v106 = vsel %vm86, %v27, 0
    %v109 = vsel %vm86, %v28, 0
    %v112 = vsel %vm86, %v29, 0
    %v115 = vsel %vm86, %v30, 0
    %v118 = vsel %vm86, %v31, 0
    %v121 = vsel %vm86, %v32, 0
    %v124 = vsel %vm86, %v33, 0
    %v127 = vsel %vm86, %v34, 0
    %v130 = vsel %vm86, %v35, 0
    %v133 = vsel %vm86, %v36, 0
    %v136 = vsel %vm86, %v37, 0
    %138 = vmatprep.subr.mxu0 0.0
    %139 = vmatpush1.xpose.msra.mxu0 %v91
    %140 = vmatprep.subr.mxu0 0.0
    %141 = vmatpush1.xpose.msra.mxu0 %v94
    %142 = vmatprep.subr.mxu0 0.0
    %143 = vmatpush1.xpose.msra.mxu0 %v97
    %144 = vmatprep.subr.mxu0 0.0
    %145 = vmatpush1.xpose.msra.mxu0 %v100
    %146 = vmatprep.subr.mxu0 0.0
    %147 = vmatpush1.xpose.msra.mxu0 %v103
    %148 = vmatprep.subr.mxu0 0.0
    %149 = vmatpush1.xpose.msra.mxu0 %v106
    %150 = vmatprep.subr.mxu0 0.0
    %151 = vmatpush1.xpose.msra.mxu0 %v109
    %152 = vmatprep.subr.mxu0 0.0
    %153 = vmatpush1.xpose.msra.mxu0 %v112
    %154 = vmatprep.subr.mxu0 0.0
    %155 = vmatpush1.xpose.msra.mxu0 %v115
    %156 = vmatprep.subr.mxu0 0.0
    %157 = vmatpush1.xpose.msra.mxu0 %v118
    %158 = vmatprep.subr.mxu0 0.0
    %159 = vmatpush1.xpose.msra.mxu0 %v121
    %160 = vmatprep.subr.mxu0 0.0
    %161 = vmatpush1.xpose.msra.mxu0 %v124
    %162 = vmatprep.subr.mxu0 0.0
    %163 = vmatpush1.xpose.msra.mxu0 %v127
    %164 = vmatprep.subr.mxu0 0.0
    %165 = vmatpush1.xpose.msra.mxu0 %v130
    %166 = vmatprep.subr.mxu0 0.0
    %167 = vmatpush1.xpose.msra.mxu0 %v133
    %168 = vmatprep.subr.mxu0 0.0
    %169 = vmatpush1.xpose.msra.mxu0 %v136
    %170 = vmatprep.subr.mxu0 0.0
    %171 = vmatpush1.xpose.msra.mxu0 0.0
    %172 = vmatprep.subr.mxu0 0.0
    %173 = vmatpush1.xpose.msra.mxu0 0.0
    %174 = vmatprep.subr.mxu0 0.0
    %175 = vmatpush1.xpose.msra.mxu0 0.0
    %176 = vmatprep.subr.mxu0 0.0
    %177 = vmatpush1.xpose.msra.mxu0 0.0
    %178 = vmatprep.subr.mxu0 0.0
    %179 = vmatpush1.xpose.msra.mxu0 0.0
    %180 = vmatprep.subr.mxu0 0.0
    %181 = vmatpush1.xpose.msra.mxu0 0.0
    %182 = vmatprep.subr.mxu0 0.0
    %183 = vmatpush1.xpose.msra.mxu0 0.0
    %184 = vmatprep.subr.mxu0 0.0
    %185 = vmatpush1.xpose.msra.mxu0 0.0
    %186 = vmatprep.subr.mxu0 0.0
    %187 = vmatpush1.xpose.msra.mxu0 0.0
    %188 = vmatprep.subr.mxu0 0.0
    %189 = vmatpush1.xpose.msra.mxu0 0.0
    %190 = vmatprep.subr.mxu0 0.0
    %191 = vmatpush1.xpose.msra.mxu0 0.0
    %192 = vmatprep.subr.mxu0 0.0
    %193 = vmatpush1.xpose.msra.mxu0 0.0
    %194 = vmatprep.subr.mxu0 0.0
    %195 = vmatpush1.xpose.msra.mxu0 0.0
    %196 = vmatprep.subr.mxu0 0.0
    %197 = vmatpush1.xpose.msra.mxu0 0.0
    %198 = vmatprep.subr.mxu0 0.0
    %199 = vmatpush1.xpose.msra.mxu0 0.0
    %200 = vmatprep.subr.mxu0 0.0
    %201 = vmatpush1.xpose.msra.mxu0 0.0
    %202 = vmatprep.mubr.f32.mxu0 0.0
    %203 = vmatmul.mubr.f32.gmra.mrb[0].mxu0 %v88
    %v204 = vpop.f32.mrb[0].mxu0
    %v205 = vadd.f32 0.0, %v204
    %v206 = vpop.f32.mrb[0].mxu0
    %207 = vdwg.mxu0
    %v209 = vsel %vm86, %v21, 0
    %v212 = vsel %vm86, %v38, 0
    %v215 = vsel %vm86, %v39, 0
    %v218 = vsel %vm86, %v40, 0
    %v221 = vsel %vm86, %v41, 0
    %v224 = vsel %vm86, %v42, 0
    %v227 = vsel %vm86, %v43, 0
    %v230 = vsel %vm86, %v44, 0
    %v233 = vsel %vm86, %v45, 0
    %v236 = vsel %vm86, %v46, 0
    %v239 = vsel %vm86, %v47, 0
    %v242 = vsel %vm86, %v48, 0
    %v245 = vsel %vm86, %v49, 0
    %v248 = vsel %vm86, %v50, 0
    %v251 = vsel %vm86, %v51, 0
    %v254 = vsel %vm86, %v52, 0
    %v257 = vsel %vm86, %v53, 0
    %259 = vmatprep.subr.mxu0 0.0
    %260 = vmatpush1.xpose.msra.mxu0 %v212
    %261 = vmatprep.subr.mxu0 0.0
    %262 = vmatpush1.xpose.msra.mxu0 %v215
    %263 = vmatprep.subr.mxu0 0.0
    %264 = vmatpush1.xpose.msra.mxu0 %v218
    %265 = vmatprep.subr.mxu0 0.0
    %266 = vmatpush1.xpose.msra.mxu0 %v221
    %267 = vmatprep.subr.mxu0 0.0
    %268 = vmatpush1.xpose.msra.mxu0 %v224
    %269 = vmatprep.subr.mxu0 0.0
    %270 = vmatpush1.xpose.msra.mxu0 %v227
    %271 = vmatprep.subr.mxu0 0.0
    %272 = vmatpush1.xpose.msra.mxu0 %v230
    %273 = vmatprep.subr.mxu0 0.0
    %274 = vmatpush1.xpose.msra.mxu0 %v233
    %275 = vmatprep.subr.mxu0 0.0
    %276 = vmatpush1.xpose.msra.mxu0 %v236
    %277 = vmatprep.subr.mxu0 0.0
    %278 = vmatpush1.xpose.msra.mxu0 %v239
    %279 = vmatprep.subr.mxu0 0.0
    %280 = vmatpush1.xpose.msra.mxu0 %v242
    %281 = vmatprep.subr.mxu0 0.0
    %282 = vmatpush1.xpose.msra.mxu0 %v245
    %283 = vmatprep.subr.mxu0 0.0
    %284 = vmatpush1.xpose.msra.mxu0 %v248
    %285 = vmatprep.subr.mxu0 0.0
    %286 = vmatpush1.xpose.msra.mxu0 %v251
    %287 = vmatprep.subr.mxu0 0.0
    %288 = vmatpush1.xpose.msra.mxu0 %v254
    %289 = vmatprep.subr.mxu0 0.0
    %290 = vmatpush1.xpose.msra.mxu0 %v257
    %291 = vmatprep.subr.mxu0 0.0
    %292 = vmatpush1.xpose.msra.mxu0 0.0
    %293 = vmatprep.subr.mxu0 0.0
    %294 = vmatpush1.xpose.msra.mxu0 0.0
    %295 = vmatprep.subr.mxu0 0.0
    %296 = vmatpush1.xpose.msra.mxu0 0.0
    %297 = vmatprep.subr.mxu0 0.0
    %298 = vmatpush1.xpose.msra.mxu0 0.0
    %299 = vmatprep.subr.mxu0 0.0
    %300 = vmatpush1.xpose.msra.mxu0 0.0
    %301 = vmatprep.subr.mxu0 0.0
    %302 = vmatpush1.xpose.msra.mxu0 0.0
    %303 = vmatprep.subr.mxu0 0.0
    %304 = vmatpush1.xpose.msra.mxu0 0.0
    %305 = vmatprep.subr.mxu0 0.0
    %306 = vmatpush1.xpose.msra.mxu0 0.0
    %307 = vmatprep.subr.mxu0 0.0
    %308 = vmatpush1.xpose.msra.mxu0 0.0
    %309 = vmatprep.subr.mxu0 0.0
    %310 = vmatpush1.xpose.msra.mxu0 0.0
    %311 = vmatprep.subr.mxu0 0.0
    %312 = vmatpush1.xpose.msra.mxu0 0.0
    %313 = vmatprep.subr.mxu0 0.0
    %314 = vmatpush1.xpose.msra.mxu0 0.0
    %315 = vmatprep.subr.mxu0 0.0
    %316 = vmatpush1.xpose.msra.mxu0 0.0
    %317 = vmatprep.subr.mxu0 0.0
    %318 = vmatpush1.xpose.msra.mxu0 0.0
    %319 = vmatprep.subr.mxu0 0.0
    %320 = vmatpush1.xpose.msra.mxu0 0.0
    %321 = vmatprep.subr.mxu0 0.0
    %322 = vmatpush1.xpose.msra.mxu0 0.0
    %323 = vmatprep.mubr.f32.mxu0 0.0
    %324 = vmatmul.mubr.f32.gmra.mrb[0].mxu0 %v209
    %v325 = vpop.f32.mrb[0].mxu0
    %v326 = vadd.f32 0.0, %v325
    %v327 = vpop.f32.mrb[0].mxu0
    %328 = vdwg.mxu0
    %v329 = vlaneseq
    %v330 = vand.u32 %v329, 127
    %vm331 = vcmp.lt.s32.totalorder %v330, 8
    %v332 = vsel %vm331, %v205, -1e+09
    %v333 = vsel %vm331, %v326, -1e+09
    %334 = vmax.xlane.f32.xlu0 %v332
    %v335 = vpop.xlane.xlu0 %334
    %336 = vmax.xlane.f32.xlu0 %v333
    %v337 = vpop.xlane.xlu0 %336
    %v338 = vsub.f32 %v332, %v335
    %v339 = vsub.f32 %v333, %v337
    %v340 = vmul.f32 %v338, 1.442695
    %v341 = vpow.pop %v340
    %v342 = vmul.f32 %v339, 1.442695
    %v343 = vpow.pop %v342
    %344 = vadd.xlane.f32.xlu0 %v341
    %v345 = vpop.xlane.xlu0 %344
    %346 = vadd.xlane.f32.xlu0 %v343
    %v347 = vpop.xlane.xlu0 %346
    %v348 = vrcp.pop %v345
    %v349 = vmul.f32 1.0, %v348
    %v350 = vrcp.pop %v347
    %v351 = vmul.f32 1.0, %v350
    %v352 = vmul.f32 %v341, %v349
    %v353 = vmul.f32 %v343, %v351
    %354 = vmatprep.subr.mxu0 0.0
    %355 = vmatpush1.msra.mxu0 %v54
    %356 = vmatprep.subr.mxu0 0.0
    %357 = vmatpush1.msra.mxu0 %v55
    %358 = vmatprep.subr.mxu0 0.0
    %359 = vmatpush1.msra.mxu0 %v56
    %360 = vmatprep.subr.mxu0 0.0
    %361 = vmatpush1.msra.mxu0 %v57
    %362 = vmatprep.subr.mxu0 0.0
    %363 = vmatpush1.msra.mxu0 %v58
    %364 = vmatprep.subr.mxu0 0.0
    %365 = vmatpush1.msra.mxu0 %v59
    %366 = vmatprep.subr.mxu0 0.0
    %367 = vmatpush1.msra.mxu0 %v60
    %368 = vmatprep.subr.mxu0 0.0
    %369 = vmatpush1.msra.mxu0 %v61
    %370 = vmatprep.subr.mxu0 0.0
    %371 = vmatpush1.msra.mxu0 %v62
    %372 = vmatprep.subr.mxu0 0.0
    %373 = vmatpush1.msra.mxu0 %v63
    %374 = vmatprep.subr.mxu0 0.0
    %375 = vmatpush1.msra.mxu0 %v64
    %376 = vmatprep.subr.mxu0 0.0
    %377 = vmatpush1.msra.mxu0 %v65
    %378 = vmatprep.subr.mxu0 0.0
    %379 = vmatpush1.msra.mxu0 %v66
    %380 = vmatprep.subr.mxu0 0.0
    %381 = vmatpush1.msra.mxu0 %v67
    %382 = vmatprep.subr.mxu0 0.0
    %383 = vmatpush1.msra.mxu0 %v68
    %384 = vmatprep.subr.mxu0 0.0
    %385 = vmatpush1.msra.mxu0 %v69
    %386 = vmatprep.subr.mxu0 0.0
    %387 = vmatpush1.msra.mxu0 0.0
    %388 = vmatprep.subr.mxu0 0.0
    %389 = vmatpush1.msra.mxu0 0.0
    %390 = vmatprep.subr.mxu0 0.0
    %391 = vmatpush1.msra.mxu0 0.0
    %392 = vmatprep.subr.mxu0 0.0
    %393 = vmatpush1.msra.mxu0 0.0
    %394 = vmatprep.subr.mxu0 0.0
    %395 = vmatpush1.msra.mxu0 0.0
    %396 = vmatprep.subr.mxu0 0.0
    %397 = vmatpush1.msra.mxu0 0.0
    %398 = vmatprep.subr.mxu0 0.0
    %399 = vmatpush1.msra.mxu0 0.0
    %400 = vmatprep.subr.mxu0 0.0
    %401 = vmatpush1.msra.mxu0 0.0
    %402 = vmatprep.subr.mxu0 0.0
    %403 = vmatpush1.msra.mxu0 0.0
    %404 = vmatprep.subr.mxu0 0.0
    %405 = vmatpush1.msra.mxu0 0.0
    %406 = vmatprep.subr.mxu0 0.0
    %407 = vmatpush1.msra.mxu0 0.0
    %408 = vmatprep.subr.mxu0 0.0
    %409 = vmatpush1.msra.mxu0 0.0
    %410 = vmatprep.subr.mxu0 0.0
    %411 = vmatpush1.msra.mxu0 0.0
    %412 = vmatprep.subr.mxu0 0.0
    %413 = vmatpush1.msra.mxu0 0.0
    %414 = vmatprep.subr.mxu0 0.0
    %415 = vmatpush1.msra.mxu0 0.0
    %416 = vmatprep.subr.mxu0 0.0
    %417 = vmatpush1.msra.mxu0 0.0
    %418 = vmatprep.mubr.f32.mxu0 0.0
    %419 = vmatmul.mubr.f32.gmra.mrb[0].mxu0 %v352
    %v420 = vpop.f32.mrb[0].mxu0
    %v421 = vadd.f32 0.0, %v420
    %v422 = vpop.f32.mrb[0].mxu0
    %423 = vdwg.mxu0
    %424 = vmatprep.subr.mxu0 0.0
    %425 = vmatpush1.msra.mxu0 %v70
    %426 = vmatprep.subr.mxu0 0.0
    %427 = vmatpush1.msra.mxu0 %v71
    %428 = vmatprep.subr.mxu0 0.0
    %429 = vmatpush1.msra.mxu0 %v72
    %430 = vmatprep.subr.mxu0 0.0
    %431 = vmatpush1.msra.mxu0 %v73
    %432 = vmatprep.subr.mxu0 0.0
    %433 = vmatpush1.msra.mxu0 %v74
    %434 = vmatprep.subr.mxu0 0.0
    %435 = vmatpush1.msra.mxu0 %v75
    %436 = vmatprep.subr.mxu0 0.0
    %437 = vmatpush1.msra.mxu0 %v76
    %438 = vmatprep.subr.mxu0 0.0
    %439 = vmatpush1.msra.mxu0 %v77
    %440 = vmatprep.subr.mxu0 0.0
    %441 = vmatpush1.msra.mxu0 %v78
    %442 = vmatprep.subr.mxu0 0.0
    %443 = vmatpush1.msra.mxu0 %v79
    %444 = vmatprep.subr.mxu0 0.0
    %445 = vmatpush1.msra.mxu0 %v80
    %446 = vmatprep.subr.mxu0 0.0
    %447 = vmatpush1.msra.mxu0 %v81
    %448 = vmatprep.subr.mxu0 0.0
    %449 = vmatpush1.msra.mxu0 %v82
    %450 = vmatprep.subr.mxu0 0.0
    %451 = vmatpush1.msra.mxu0 %v83
    %452 = vmatprep.subr.mxu0 0.0
    %453 = vmatpush1.msra.mxu0 %v84
    %454 = vmatprep.subr.mxu0 0.0
    %455 = vmatpush1.msra.mxu0 %v85
    %456 = vmatprep.subr.mxu0 0.0
    %457 = vmatpush1.msra.mxu0 0.0
    %458 = vmatprep.subr.mxu0 0.0
    %459 = vmatpush1.msra.mxu0 0.0
    %460 = vmatprep.subr.mxu0 0.0
    %461 = vmatpush1.msra.mxu0 0.0
    %462 = vmatprep.subr.mxu0 0.0
    %463 = vmatpush1.msra.mxu0 0.0
    %464 = vmatprep.subr.mxu0 0.0
    %465 = vmatpush1.msra.mxu0 0.0
    %466 = vmatprep.subr.mxu0 0.0
    %467 = vmatpush1.msra.mxu0 0.0
    %468 = vmatprep.subr.mxu0 0.0
    %469 = vmatpush1.msra.mxu0 0.0
    %470 = vmatprep.subr.mxu0 0.0
    %471 = vmatpush1.msra.mxu0 0.0
    %472 = vmatprep.subr.mxu0 0.0
    %473 = vmatpush1.msra.mxu0 0.0
    %474 = vmatprep.subr.mxu0 0.0
    %475 = vmatpush1.msra.mxu0 0.0
    %476 = vmatprep.subr.mxu0 0.0
    %477 = vmatpush1.msra.mxu0 0.0
    %478 = vmatprep.subr.mxu0 0.0
    %479 = vmatpush1.msra.mxu0 0.0
    %480 = vmatprep.subr.mxu0 0.0
    %481 = vmatpush1.msra.mxu0 0.0
    %482 = vmatprep.subr.mxu0 0.0
    %483 = vmatpush1.msra.mxu0 0.0
    %484 = vmatprep.subr.mxu0 0.0
    %485 = vmatpush1.msra.mxu0 0.0
    %486 = vmatprep.subr.mxu0 0.0
    %487 = vmatpush1.msra.mxu0 0.0
    %488 = vmatprep.mubr.f32.mxu0 0.0
    %489 = vmatmul.mubr.f32.gmra.mrb[0].mxu0 %v353
    %v490 = vpop.f32.mrb[0].mxu0
    %v491 = vadd.f32 0.0, %v490
    %v492 = vpop.f32.mrb[0].mxu0
    %493 = vdwg.mxu0
    %494 = vst [vmem:[#allocation2] sm:$0xff] %v421
    %495 = vst [vmem:[#allocation2 + $0x8] sm:$0xff] %v491
    %496 = vst [vmem:[#allocation4] sm:$0xff] %v352
    %497 = vst [vmem:[#allocation4 + $0x8] sm:$0xff] %v353
    // Predicated region
    $region14: #{tpu_custom_call.1} parent=1 // pred_check
      _
    $region15: #{tpu_custom_call.1} parent=1 // pred_check_branch
      %499 = sbr.rel (0) target = $region17
    $region16: #{tpu_custom_call.1} parent=1 // pred_region
      %s501 = ssub.s32 256, 256
      %502 = vsyncadd [#allocation3], %s501
      %s503 = sshll.u32 [#allocation2], 4
      %s504 = int_to_ptr.vmem [resolvable:$true] %s503
      %509 = dma.vmem_to_hbm [thread:$0]  %s504, 256, %s3, [#allocation3], 128, 128, 8
    $region17: #{tpu_custom_call.1} parent=1 // pred_fallthru
      _
    // Predicated region
    $region18: #{tpu_custom_call.1} parent=1 // pred_check
      _
    $region19: #{tpu_custom_call.1} parent=1 // pred_check_branch
      %511 = sbr.rel (0) target = $region21
    $region20: #{tpu_custom_call.1} parent=1 // pred_region
      %s513 = ssub.s32 256, 256
      %514 = vsyncadd [#allocation5], %s513
      %s515 = sshll.u32 [#allocation4], 4
      %s516 = int_to_ptr.vmem [resolvable:$true] %s515
      %521 = dma.vmem_to_hbm [thread:$0]  %s516, 256, %s4, [#allocation5], 128, 128, 8
    $region21: #{tpu_custom_call.1} parent=1 // pred_fallthru
      _
    // Predicated region
    $region22: #{tpu_custom_call.1} parent=1 // pred_check
      _
    $region23: #{tpu_custom_call.1} parent=1 // pred_check_branch
      %523 = sbr.rel (0) target = $region25
    $region24: #{tpu_custom_call.1} parent=1 // pred_region
      %524 = dma.done [#allocation3], 256
    $region25: #{tpu_custom_call.1} parent=1 // pred_fallthru
      _
    // Predicated region
    $region26: #{tpu_custom_call.1} parent=1 // pred_check
      _
    $region27: #{tpu_custom_call.1} parent=1 // pred_check_branch
      %526 = sbr.rel (0) target = $region29
    $region28: #{tpu_custom_call.1} parent=1 // pred_region
      %527 = dma.done [#allocation5], 256
    $region29: #{tpu_custom_call.1} parent=1 // pred_fallthru
      _
    %528 = vsyncpa [#allocation3], 1
    %529 = vsyncpa [#allocation5], 1

</llo_original>
